<compile_context>
chip_gen: v7x
topology: tpu7x:2x2x1
jax: 0.10.0
libtpu: 0.0.40
codegen_flags: <defaults>
</compile_context>

<pallas_src>
import jax
import jax.numpy as jnp
from jax import lax
from jax.experimental import pallas as pl
from jax.experimental.pallas import tpu as pltpu  # noqa: F401  (TPU backend)


# ---------------------------------------------------------------------------
# Packed-parameter layout (rows of one (88, 128) f32 array; starts 8-aligned)
# ---------------------------------------------------------------------------
_WC_R = 0    # rows  0..31, cols 0..15 : block-diag conv weight (pool_pos*8+ch, pool_pos*4+tap)
_BC_R = 32   # rows 32..39, all lanes  : conv bias bconv[ch] pre-broadcast along lanes
_W0_R = 40   # rows 40..48, cols 0..8  : RNN layer-0 W_ih^T
_B0_R = 49   # row  49,     cols 0..8  : RNN layer-0 b_ih + b_hh
_W1_R = 56   # rows 56..64, cols 0..8  : RNN layer-1 W_ih^T
_B1_R = 65   # row  65,     cols 0..8  : RNN layer-1 b_ih + b_hh
_WO_R = 72   # rows 72..80, cols 0..2  : head W_out^T (zero-padded to 128 lanes)
_BO_R = 81   # row  81,     cols 0..2  : head bias    (zero-padded to 128 lanes)
_PRM_ROWS = 88


# ---------------------------------------------------------------------------
# Fused Pallas kernel
# ---------------------------------------------------------------------------
def fused_kernel(p_ref, prm_ref, o_ref):
    """p_ref   : (16, 128) im2col of sample 0; rows = pool_pos*4 + conv_tap,
                 cols 0..8 = pooled spatial positions (row-major), rest zero.
    prm_ref : (88, 128) merged parameter block (layout above).
    o_ref   : (8, 128)  lane-dense output; only [0, :3] is meaningful.
    """
    # Conv2d(1->8 needed channels, k=2): all 4 pool taps in ONE MXU matmul.
    c = jnp.dot(prm_ref[_WC_R:_WC_R + 32, 0:16], p_ref[...],
                preferred_element_type=jnp.float32)                  # (32, 128)
    # MaxPool2d(2): max over the 4 pool taps = max over the 4 8-row chunks.
    pooled = jnp.maximum(jnp.maximum(c[0:8, :], c[8:16, :]),
                         jnp.maximum(c[16:24, :], c[24:32, :]))      # (8, 128)
    # Conv bias + ReLU commute with the tap max (bias identical per channel
    # across taps, ReLU monotone), so add/ReLU once on the pooled result.
    x0 = jnp.maximum(pooled[:, 0:9] + prm_ref[_BC_R:_BC_R + 8, 0:9], 0.0)  # (8, 9)
    # 2-layer tanh RNN (single timestep, h0 = 0) + ReLU + Linear(9->3, padded).
    h1 = jnp.tanh(jnp.dot(x0, prm_ref[_W0_R:_W0_R + 9, 0:9],
                          preferred_element_type=jnp.float32)
                  + prm_ref[_B0_R:_B0_R + 1, 0:9])
    h2 = jnp.tanh(jnp.dot(h1, prm_ref[_W1_R:_W1_R + 9, 0:9],
                          preferred_element_type=jnp.float32)
                  + prm_ref[_B1_R:_B1_R + 1, 0:9])
    o_ref[...] = (jnp.dot(jnp.maximum(h2, 0.0), prm_ref[_WO_R:_WO_R + 9, :],
                          preferred_element_type=jnp.float32)
                  + prm_ref[_BO_R:_BO_R + 1, :])


# ---------------------------------------------------------------------------
# pallas_call wrapper (grid-less: single invocation, 2 input DMAs, 1 output)
# ---------------------------------------------------------------------------
def fused_forward(patches, prm):
    return pl.pallas_call(
        fused_kernel,
        out_shape=jax.ShapeDtypeStruct((8, 128), jnp.float32),
        in_specs=[pl.BlockSpec(patches.shape, lambda *_: (0, 0)),
                  pl.BlockSpec(prm.shape, lambda *_: (0, 0))],
        out_specs=pl.BlockSpec((8, 128), lambda *_: (0, 0)),
    )(patches, prm)
    # TODO(synk): if N ever grows and full y is needed, add a grid over the
    # N*9 lane axis gated on v7x (2 TCs) with dimension_semantics=("parallel",).


# ---------------------------------------------------------------------------
# Host-side glue: im2col packing, parameter repacking, forward
# ---------------------------------------------------------------------------
def build_patches(x):
    """x: (N, 1, 7, 7) -> (16, 128) im2col of sample 0, lane-padded.

    Rows = pool_pos*4 + conv_tap; cols 0..8 = pooled 3x3 positions (row-major).
    Only sample 0 is gathered: forward() returns y[0], which depends solely on
    pooled channel 0 of sample 0.
    """
    x0 = x[0, 0].astype(jnp.float32)                      # (7, 7)
    rows = []
    for di in range(2):              # pool-window row offset
        for dj in range(2):          # pool-window col offset
            for ki in range(2):      # conv kernel row
                for kj in range(2):  # conv kernel col
                    sub = x0[di + ki: di + ki + 6: 2, dj + kj: dj + kj + 6: 2]
                    rows.append(sub.reshape(9))
    p = jnp.stack(rows, axis=0)                           # (16, 9)
    return jnp.pad(p, ((0, 0), (0, 128 - 9)))             # (16, 128)
    # TODO(synk): if xprof shows this host glue dominating, move the static
    # strided gather in-kernel (feed x[:1] padded to (8,128) directly).


def init_params(key):
    ks = jax.random.split(key, 12)
    u = lambda k, shape, s: jax.random.uniform(k, shape, jnp.float32, -s, s)
    return {
        "wconv": u(ks[0], (32, 1, 2, 2), 0.5),
        "bconv": u(ks[1], (32,), 0.5),
        "wih0": u(ks[2], (9, 9), 1.0 / 3.0),
        "whh0": u(ks[3], (9, 9), 1.0 / 3.0),   # unused: multiplies the zero h0
        "bih0": u(ks[4], (9,), 1.0 / 3.0),
        "bhh0": u(ks[5], (9,), 1.0 / 3.0),
        "wih1": u(ks[6], (9, 9), 1.0 / 3.0),
        "whh1": u(ks[7], (9, 9), 1.0 / 3.0),   # unused: multiplies the zero h0
        "bih1": u(ks[8], (9,), 1.0 / 3.0),
        "bhh1": u(ks[9], (9,), 1.0 / 3.0),
        "wout": u(ks[10], (3, 9), 1.0 / 3.0),
        "bout": u(ks[11], (3,), 1.0 / 3.0),
    }


def pack_params(p):
    """One-time host-side repack into ONE (88, 128) lane/sublane-friendly block."""
    prm = jnp.zeros((_PRM_ROWS, 128), jnp.float32)
    w8 = p["wconv"][:8].reshape(8, 4).astype(jnp.float32)          # tap = ki*2 + kj
    prm = prm.at[_WC_R:_WC_R + 32, 0:16].set(
        jnp.kron(jnp.eye(4, dtype=jnp.float32), w8))               # (32, 16) block-diag
    prm = prm.at[_BC_R:_BC_R + 8, :].set(
        jnp.broadcast_to(p["bconv"][:8, None].astype(jnp.float32), (8, 128)))
    prm = prm.at[_W0_R:_W0_R + 9, 0:9].set(p["wih0"].T)
    prm = prm.at[_B0_R, 0:9].set(p["bih0"] + p["bhh0"])
    prm = prm.at[_W1_R:_W1_R + 9, 0:9].set(p["wih1"].T)
    prm = prm.at[_B1_R, 0:9].set(p["bih1"] + p["bhh1"])
    prm = prm.at[_WO_R:_WO_R + 9, 0:3].set(p["wout"].T)
    prm = prm.at[_BO_R, 0:3].set(p["bout"])
    return prm
    # TODO(synk): optional bf16 storage of this block (keep f32 accumulate) for
    # v6e/v7x once the 1e-5 tolerance is re-verified.


@jax.jit
def forward(x, prm):
    """Pallas implementation of ModelCNNR.forward.  x: (N, 1, 7, 7) -> (3,)"""
    y_pad = fused_forward(build_patches(x), prm)                   # (8, 128)
    return y_pad[0, :3]
    # TODO(synk): self.stats/self.log/self.plot bookkeeping (and conv_b2, which
    # forward() never calls) are host-side Python side effects with no tensor
    # semantics and are intentionally not modeled.


def reference_forward(x, p):
    """Pure-JAX reference mirroring the PyTorch forward exactly."""
    conv = lax.conv_general_dilated(
        x, p["wconv"], (1, 1), "VALID",
        dimension_numbers=("NCHW", "OIHW", "NCHW"))
    conv = jnp.maximum(conv + p["bconv"].reshape(1, 32, 1, 1), 0.0)
    pooled = lax.reduce_window(conv, -jnp.inf, lax.max,
                               (1, 1, 2, 2), (1, 1, 2, 2), "VALID")
    rnn_in = pooled.reshape(1, -1, 9)[0]                           # (N*32, 9)
    h1 = jnp.tanh(rnn_in @ p["wih0"].T + p["bih0"] + p["bhh0"])
    h2 = jnp.tanh(h1 @ p["wih1"].T + p["bih1"] + p["bhh1"])
    y = jnp.maximum(h2, 0.0) @ p["wout"].T + p["bout"]
    return y[0]


if __name__ == "__main__":
    key = jax.random.PRNGKey(0)
    kx, kp = jax.random.split(key)
    x = jax.random.normal(kx, (2, 1, 7, 7), jnp.float32)   # NCHW, like PyTorch
    params = init_params(kp)
    prm = pack_params(params)

    out = jax.block_until_ready(forward(x, prm))
    ref = reference_forward(x, params)

    assert out.shape == (3,), out.shape
    assert jnp.allclose(out, ref, atol=1e-5, rtol=1e-5), (out, ref)
    print("KERNEL_OK")
</pallas_src>

<mosaic_0001>
module attributes {stable_mosaic.version = 11 : i64} {
  func.func @fused_kernel(%arg0: memref<16x128xf32, #tpu.memory_space<vmem>>, %arg1: memref<88x128xf32, #tpu.memory_space<vmem>>, %arg2: memref<8x128xf32, #tpu.memory_space<vmem>>) attributes {dimension_semantics = [], scalar_prefetch = 0 : i64, scratch_operands = 0 : i64, tpu.core_type = #tpu.core_type<tc>} {
    %c0 = arith.constant 0 : index
    %c0_0 = arith.constant 0 : index
    %0 = vector.load %arg1[%c0, %c0_0] : memref<88x128xf32, #tpu.memory_space<vmem>>, vector<32x16xf32>
    %c0_1 = arith.constant 0 : index
    %c0_2 = arith.constant 0 : index
    %1 = vector.load %arg0[%c0_1, %c0_2] : memref<16x128xf32, #tpu.memory_space<vmem>>, vector<16x128xf32>
    %cst = arith.constant dense<0.000000e+00> : vector<32x128xf32>
    %2 = tpu.matmul %0, %1, %cst {dimension_numbers = #tpu.dot_dimension_numbers<[1], [0], [0], [1], [0, 0, 1, 1], [], []>} : vector<32x16xf32>, vector<16x128xf32>, vector<32x128xf32> -> vector<32x128xf32>
    %3 = vector.extract_strided_slice %2 {offsets = [0, 0], sizes = [8, 128], strides = [1, 1]} : vector<32x128xf32> to vector<8x128xf32>
    %4 = vector.extract_strided_slice %2 {offsets = [8, 0], sizes = [8, 128], strides = [1, 1]} : vector<32x128xf32> to vector<8x128xf32>
    %5 = arith.maximumf %3, %4 : vector<8x128xf32>
    %6 = vector.extract_strided_slice %2 {offsets = [16, 0], sizes = [8, 128], strides = [1, 1]} : vector<32x128xf32> to vector<8x128xf32>
    %7 = vector.extract_strided_slice %2 {offsets = [24, 0], sizes = [8, 128], strides = [1, 1]} : vector<32x128xf32> to vector<8x128xf32>
    %8 = arith.maximumf %6, %7 : vector<8x128xf32>
    %9 = arith.maximumf %5, %8 : vector<8x128xf32>
    %10 = vector.extract_strided_slice %9 {offsets = [0, 0], sizes = [8, 9], strides = [1, 1]} : vector<8x128xf32> to vector<8x9xf32>
    %c32 = arith.constant 32 : index
    %c0_3 = arith.constant 0 : index
    %11 = vector.load %arg1[%c32, %c0_3] : memref<88x128xf32, #tpu.memory_space<vmem>>, vector<8x9xf32>
    %12 = arith.addf %10, %11 : vector<8x9xf32>
    %cst_4 = arith.constant 0.000000e+00 : f32
    %13 = vector.broadcast %cst_4 : f32 to vector<8x9xf32>
    %14 = arith.maximumf %12, %13 : vector<8x9xf32>
    %c40 = arith.constant 40 : index
    %c0_5 = arith.constant 0 : index
    %15 = vector.load %arg1[%c40, %c0_5] : memref<88x128xf32, #tpu.memory_space<vmem>>, vector<9x9xf32>
    %cst_6 = arith.constant dense<0.000000e+00> : vector<8x9xf32>
    %16 = tpu.matmul %14, %15, %cst_6 {dimension_numbers = #tpu.dot_dimension_numbers<[1], [0], [0], [1], [0, 0, 1, 1], [], []>} : vector<8x9xf32>, vector<9x9xf32>, vector<8x9xf32> -> vector<8x9xf32>
    %c49 = arith.constant 49 : index
    %c0_7 = arith.constant 0 : index
    %17 = vector.load %arg1[%c49, %c0_7] : memref<88x128xf32, #tpu.memory_space<vmem>>, vector<1x9xf32>
    %18 = vector.broadcast %17 : vector<1x9xf32> to vector<8x9xf32>
    %19 = arith.addf %16, %18 : vector<8x9xf32>
    %20 = math.tanh %19 : vector<8x9xf32>
    %c56 = arith.constant 56 : index
    %c0_8 = arith.constant 0 : index
    %21 = vector.load %arg1[%c56, %c0_8] : memref<88x128xf32, #tpu.memory_space<vmem>>, vector<9x9xf32>
    %cst_9 = arith.constant dense<0.000000e+00> : vector<8x9xf32>
    %22 = tpu.matmul %20, %21, %cst_9 {dimension_numbers = #tpu.dot_dimension_numbers<[1], [0], [0], [1], [0, 0, 1, 1], [], []>} : vector<8x9xf32>, vector<9x9xf32>, vector<8x9xf32> -> vector<8x9xf32>
    %c65 = arith.constant 65 : index
    %c0_10 = arith.constant 0 : index
    %23 = vector.load %arg1[%c65, %c0_10] : memref<88x128xf32, #tpu.memory_space<vmem>>, vector<1x9xf32>
    %24 = vector.broadcast %23 : vector<1x9xf32> to vector<8x9xf32>
    %25 = arith.addf %22, %24 : vector<8x9xf32>
    %26 = math.tanh %25 : vector<8x9xf32>
    %cst_11 = arith.constant 0.000000e+00 : f32
    %27 = vector.broadcast %cst_11 : f32 to vector<8x9xf32>
    %28 = arith.maximumf %26, %27 : vector<8x9xf32>
    %c72 = arith.constant 72 : index
    %c0_12 = arith.constant 0 : index
    %29 = vector.load %arg1[%c72, %c0_12] : memref<88x128xf32, #tpu.memory_space<vmem>>, vector<9x128xf32>
    %cst_13 = arith.constant dense<0.000000e+00> : vector<8x128xf32>
    %30 = tpu.matmul %28, %29, %cst_13 {dimension_numbers = #tpu.dot_dimension_numbers<[1], [0], [0], [1], [0, 0, 1, 1], [], []>} : vector<8x9xf32>, vector<9x128xf32>, vector<8x128xf32> -> vector<8x128xf32>
    %c81 = arith.constant 81 : index
    %c0_14 = arith.constant 0 : index
    %31 = vector.load %arg1[%c81, %c0_14] : memref<88x128xf32, #tpu.memory_space<vmem>>, vector<1x128xf32>
    %32 = vector.broadcast %31 : vector<1x128xf32> to vector<8x128xf32>
    %33 = arith.addf %30, %32 : vector<8x128xf32>
    %c0_15 = arith.constant 0 : index
    %c0_16 = arith.constant 0 : index
    %34 = vector.load %arg2[%c0_15, %c0_16] : memref<8x128xf32, #tpu.memory_space<vmem>>, vector<8x128xf32>
    tpu.vector_store %arg2[%c0_15, %c0_16], %33 {strides = array<i32>} : memref<8x128xf32, #tpu.memory_space<vmem>>, vector<8x128xf32>,
    return
  }
}

</mosaic_0001>

<llo_original>
// kernel: forward.1
$region0: #{forward.1}
  #allocation0 [shape = 'u32[]', space=smem, size = 0x4, offset = 0x4, fixed_abs, tag = 'smem constant byte address 0x4 - core index']
  #allocation1 [shape = 'u32[144,128]{1,0:T(1,128)}', space=vmem, size = 0x12000, scoped, tag = 'internal scratch']
  %s0 = inlined_call_operand.vmem [shape: f32[16,128], index: 0, kind: input, shape index: {}]
  %s1 = inlined_call_operand.vmem [shape: f32[88,128], index: 1, kind: input, shape index: {}]
  %s2 = inlined_call_operand.vmem [shape: f32[8,128], index: 2, kind: output, shape index: {}]
  %s3 = sld [smem:[#allocation0]]
  $region18: #{forward.1} parent=0
    _
  %s5 = ssub.s32 1, %s3
  %s6 = scalar_select 0, %s5, %s3
  // Predicated region
  $region2: #{forward.1} parent=0 // pred_check
    _
  $region3: #{forward.1} parent=0 // pred_check_branch
    %8 = sbr.rel (0) target = $region5
  $region4: #{forward.1} parent=0 // pred_region
    _
  $region5: #{forward.1} parent=0 // pred_fallthru
    _
  // Predicated region
  $region6: #{forward.1} parent=0 // pred_check
    _
  $region7: #{forward.1} parent=0 // pred_check_branch
    %10 = sbr.rel (0) target = $region9
  $region8: #{forward.1} parent=0 // pred_region
    _
  $region9: #{forward.1} parent=0 // pred_fallthru
    _
  %v11 = vld [vmem:[%s1] sm:$0xff]
  %v12 = vld [vmem:[%s1 + $0x8] sm:$0xff]
  %v13 = vld [vmem:[%s1 + $0x10] sm:$0xff]
  %v14 = vld [vmem:[%s1 + $0x18] sm:$0xff]
  %v15 = vld [vmem:[%s0] sm:$0xff]
  %v16 = vld [vmem:[%s0 + $0x8] sm:$0xff]
  %vm17 = vcmask 130048
  %v19 = vsel %vm17, %v11, 0
  %v22 = vsel %vm17, %v12, 0
  %v25 = vsel %vm17, %v13, 0
  %v28 = vsel %vm17, %v14, 0
  %30 = vmatprep.subr.mxu0 0.0
  %31 = vmatpush1.msra.mxu0 %v15
  %32 = vmatprep.subr.mxu0 0.0
  %33 = vmatpush1.msra.mxu0 %v16
  %34 = vmatprep.subr.mxu0 0.0
  %35 = vmatpush1.msra.mxu0 0.0
  %36 = vmatprep.subr.mxu0 0.0
  %37 = vmatpush1.msra.mxu0 0.0
  %38 = vmatprep.subr.mxu0 0.0
  %39 = vmatpush1.msra.mxu0 0.0
  %40 = vmatprep.subr.mxu0 0.0
  %41 = vmatpush1.msra.mxu0 0.0
  %42 = vmatprep.subr.mxu0 0.0
  %43 = vmatpush1.msra.mxu0 0.0
  %44 = vmatprep.subr.mxu0 0.0
  %45 = vmatpush1.msra.mxu0 0.0
  %46 = vmatprep.subr.mxu0 0.0
  %47 = vmatpush1.msra.mxu0 0.0
  %48 = vmatprep.subr.mxu0 0.0
  %49 = vmatpush1.msra.mxu0 0.0
  %50 = vmatprep.subr.mxu0 0.0
  %51 = vmatpush1.msra.mxu0 0.0
  %52 = vmatprep.subr.mxu0 0.0
  %53 = vmatpush1.msra.mxu0 0.0
  %54 = vmatprep.subr.mxu0 0.0
  %55 = vmatpush1.msra.mxu0 0.0
  %56 = vmatprep.subr.mxu0 0.0
  %57 = vmatpush1.msra.mxu0 0.0
  %58 = vmatprep.subr.mxu0 0.0
  %59 = vmatpush1.msra.mxu0 0.0
  %60 = vmatprep.subr.mxu0 0.0
  %61 = vmatpush1.msra.mxu0 0.0
  %62 = vmatprep.subr.mxu0 0.0
  %63 = vmatpush1.msra.mxu0 0.0
  %64 = vmatprep.subr.mxu0 0.0
  %65 = vmatpush1.msra.mxu0 0.0
  %66 = vmatprep.subr.mxu0 0.0
  %67 = vmatpush1.msra.mxu0 0.0
  %68 = vmatprep.subr.mxu0 0.0
  %69 = vmatpush1.msra.mxu0 0.0
  %70 = vmatprep.subr.mxu0 0.0
  %71 = vmatpush1.msra.mxu0 0.0
  %72 = vmatprep.subr.mxu0 0.0
  %73 = vmatpush1.msra.mxu0 0.0
  %74 = vmatprep.subr.mxu0 0.0
  %75 = vmatpush1.msra.mxu0 0.0
  %76 = vmatprep.subr.mxu0 0.0
  %77 = vmatpush1.msra.mxu0 0.0
  %78 = vmatprep.subr.mxu0 0.0
  %79 = vmatpush1.msra.mxu0 0.0
  %80 = vmatprep.subr.mxu0 0.0
  %81 = vmatpush1.msra.mxu0 0.0
  %82 = vmatprep.subr.mxu0 0.0
  %83 = vmatpush1.msra.mxu0 0.0
  %84 = vmatprep.subr.mxu0 0.0
  %85 = vmatpush1.msra.mxu0 0.0
  %86 = vmatprep.subr.mxu0 0.0
  %87 = vmatpush1.msra.mxu0 0.0
  %88 = vmatprep.subr.mxu0 0.0
  %89 = vmatpush1.msra.mxu0 0.0
  %90 = vmatprep.subr.mxu0 0.0
  %91 = vmatpush1.msra.mxu0 0.0
  %92 = vmatprep.subr.mxu0 0.0
  %93 = vmatpush1.msra.mxu0 0.0
  %94 = vmatprep.mubr.f32.mxu0 0.0
  %95 = vmatmul.mubr.f32.gmra.mrb[0].mxu0 %v19
  %v96 = vpop.f32.mrb[0].mxu0
  %v97 = vadd.f32 0.0, %v96
  %v98 = vpop.f32.mrb[0].mxu0
  %99 = vmatprep.mubr.f32.mxu0 0.0
  %100 = vmatmul.mubr.f32.gmra.mrb[0].mxu0 %v22
  %v101 = vpop.f32.mrb[0].mxu0
  %v102 = vadd.f32 0.0, %v101
  %v103 = vpop.f32.mrb[0].mxu0
  %104 = vmatprep.mubr.f32.mxu0 0.0
  %105 = vmatmul.mubr.f32.gmra.mrb[0].mxu0 %v25
  %v106 = vpop.f32.mrb[0].mxu0
  %v107 = vadd.f32 0.0, %v106
  %v108 = vpop.f32.mrb[0].mxu0
  %109 = vmatprep.mubr.f32.mxu0 0.0
  %110 = vmatmul.mubr.f32.gmra.mrb[0].mxu0 %v28
  %v111 = vpop.f32.mrb[0].mxu0
  %v112 = vadd.f32 0.0, %v111
  %v113 = vpop.f32.mrb[0].mxu0
  %114 = vdwg.mxu0
  %v115 = vmax.f32 %v97, %v102
  %v116 = vmax.f32 %v107, %v112
  %v117 = vmax.f32 %v115, %v116
  %v118 = vld [vmem:[%s1 + $0x20] sm:$0xff]
  %v119 = vadd.f32 %v117, %v118
  %v120 = vmax.f32 %v119, 0.0
  %v121 = vld [vmem:[%s1 + $0x28] sm:$0xff]
  %v122 = vld [vmem:[%s1 + $0x30] sm:$0x1]
  %v123 = vld [vmem:[%s1 + $0x31] sm:$0x1]
  %v124 = vlaneseq
  %v125 = vshrl.u32 %v124, 7
  %v126 = vsub.s32 0, %v125
  %v127 = vrot.slane %v123, %v126
  %vm128 = vcmask 72704
  %v130 = vsel %vm128, %v120, 0
  %vm132 = vcmask 1040384
  %v134 = vsel %vm132, %v122, 0
  %136 = vmatprep.subr.mxu0 0.0
  %137 = vmatpush1.msra.mxu0 %v121
  %138 = vmatprep.subr.mxu0 0.0
  %139 = vmatpush1.msra.mxu0 %v134
  %140 = vmatprep.subr.mxu0 0.0
  %141 = vmatpush1.msra.mxu0 0.0
  %142 = vmatprep.subr.mxu0 0.0
  %143 = vmatpush1.msra.mxu0 0.0
  %144 = vmatprep.subr.mxu0 0.0
  %145 = vmatpush1.msra.mxu0 0.0
  %146 = vmatprep.subr.mxu0 0.0
  %147 = vmatpush1.msra.mxu0 0.0
  %148 = vmatprep.subr.mxu0 0.0
  %149 = vmatpush1.msra.mxu0 0.0
  %150 = vmatprep.subr.mxu0 0.0
  %151 = vmatpush1.msra.mxu0 0.0
  %152 = vmatprep.subr.mxu0 0.0
  %153 = vmatpush1.msra.mxu0 0.0
  %154 = vmatprep.subr.mxu0 0.0
  %155 = vmatpush1.msra.mxu0 0.0
  %156 = vmatprep.subr.mxu0 0.0
  %157 = vmatpush1.msra.mxu0 0.0
  %158 = vmatprep.subr.mxu0 0.0
  %159 = vmatpush1.msra.mxu0 0.0
  %160 = vmatprep.subr.mxu0 0.0
  %161 = vmatpush1.msra.mxu0 0.0
  %162 = vmatprep.subr.mxu0 0.0
  %163 = vmatpush1.msra.mxu0 0.0
  %164 = vmatprep.subr.mxu0 0.0
  %165 = vmatpush1.msra.mxu0 0.0
  %166 = vmatprep.subr.mxu0 0.0
  %167 = vmatpush1.msra.mxu0 0.0
  %168 = vmatprep.subr.mxu0 0.0
  %169 = vmatpush1.msra.mxu0 0.0
  %170 = vmatprep.subr.mxu0 0.0
  %171 = vmatpush1.msra.mxu0 0.0
  %172 = vmatprep.subr.mxu0 0.0
  %173 = vmatpush1.msra.mxu0 0.0
  %174 = vmatprep.subr.mxu0 0.0
  %175 = vmatpush1.msra.mxu0 0.0
  %176 = vmatprep.subr.mxu0 0.0
  %177 = vmatpush1.msra.mxu0 0.0
  %178 = vmatprep.subr.mxu0 0.0
  %179 = vmatpush1.msra.mxu0 0.0
  %180 = vmatprep.subr.mxu0 0.0
  %181 = vmatpush1.msra.mxu0 0.0
  %182 = vmatprep.subr.mxu0 0.0
  %183 = vmatpush1.msra.mxu0 0.0
  %184 = vmatprep.subr.mxu0 0.0
  %185 = vmatpush1.msra.mxu0 0.0
  %186 = vmatprep.subr.mxu0 0.0
  %187 = vmatpush1.msra.mxu0 0.0
  %188 = vmatprep.subr.mxu0 0.0
  %189 = vmatpush1.msra.mxu0 0.0
  %190 = vmatprep.subr.mxu0 0.0
  %191 = vmatpush1.msra.mxu0 0.0
  %192 = vmatprep.subr.mxu0 0.0
  %193 = vmatpush1.msra.mxu0 0.0
  %194 = vmatprep.subr.mxu0 0.0
  %195 = vmatpush1.msra.mxu0 0.0
  %196 = vmatprep.subr.mxu0 0.0
  %197 = vmatpush1.msra.mxu0 0.0
  %198 = vmatprep.subr.mxu0 0.0
  %199 = vmatpush1.msra.mxu0 0.0
  %200 = vmatprep.mubr.f32.mxu0 0.0
  %201 = vmatmul.mubr.f32.gmra.mrb[0].mxu0 %v130
  %v202 = vpop.f32.mrb[0].mxu0
  %v203 = vadd.f32 %v127, %v202
  %v204 = vpop.f32.mrb[0].mxu0
  %205 = vdwg.mxu0
  %v206 = vtanh.pop %v203
  %v207 = vld [vmem:[%s1 + $0x38] sm:$0xff]
  %v208 = vld [vmem:[%s1 + $0x40] sm:$0x1]
  %v209 = vld [vmem:[%s1 + $0x41] sm:$0x1]
  %v210 = vlaneseq
  %v211 = vshrl.u32 %v210, 7
  %v212 = vsub.s32 0, %v211
  %v213 = vrot.slane %v209, %v212
  %v215 = vsel %vm128, %v206, 0
  %v218 = vsel %vm132, %v208, 0
  %220 = vmatprep.subr.mxu0 0.0
  %221 = vmatpush1.msra.mxu0 %v207
  %222 = vmatprep.subr.mxu0 0.0
  %223 = vmatpush1.msra.mxu0 %v218
  %224 = vmatprep.subr.mxu0 0.0
  %225 = vmatpush1.msra.mxu0 0.0
  %226 = vmatprep.subr.mxu0 0.0
  %227 = vmatpush1.msra.mxu0 0.0
  %228 = vmatprep.subr.mxu0 0.0
  %229 = vmatpush1.msra.mxu0 0.0
  %230 = vmatprep.subr.mxu0 0.0
  %231 = vmatpush1.msra.mxu0 0.0
  %232 = vmatprep.subr.mxu0 0.0
  %233 = vmatpush1.msra.mxu0 0.0
  %234 = vmatprep.subr.mxu0 0.0
  %235 = vmatpush1.msra.mxu0 0.0
  %236 = vmatprep.subr.mxu0 0.0
  %237 = vmatpush1.msra.mxu0 0.0
  %238 = vmatprep.subr.mxu0 0.0
  %239 = vmatpush1.msra.mxu0 0.0
  %240 = vmatprep.subr.mxu0 0.0
  %241 = vmatpush1.msra.mxu0 0.0
  %242 = vmatprep.subr.mxu0 0.0
  %243 = vmatpush1.msra.mxu0 0.0
  %244 = vmatprep.subr.mxu0 0.0
  %245 = vmatpush1.msra.mxu0 0.0
  %246 = vmatprep.subr.mxu0 0.0
  %247 = vmatpush1.msra.mxu0 0.0
  %248 = vmatprep.subr.mxu0 0.0
  %249 = vmatpush1.msra.mxu0 0.0
  %250 = vmatprep.subr.mxu0 0.0
  %251 = vmatpush1.msra.mxu0 0.0
  %252 = vmatprep.subr.mxu0 0.0
  %253 = vmatpush1.msra.mxu0 0.0
  %254 = vmatprep.subr.mxu0 0.0
  %255 = vmatpush1.msra.mxu0 0.0
  %256 = vmatprep.subr.mxu0 0.0
  %257 = vmatpush1.msra.mxu0 0.0
  %258 = vmatprep.subr.mxu0 0.0
  %259 = vmatpush1.msra.mxu0 0.0
  %260 = vmatprep.subr.mxu0 0.0
  %261 = vmatpush1.msra.mxu0 0.0
  %262 = vmatprep.subr.mxu0 0.0
  %263 = vmatpush1.msra.mxu0 0.0
  %264 = vmatprep.subr.mxu0 0.0
  %265 = vmatpush1.msra.mxu0 0.0
  %266 = vmatprep.subr.mxu0 0.0
  %267 = vmatpush1.msra.mxu0 0.0
  %268 = vmatprep.subr.mxu0 0.0
  %269 = vmatpush1.msra.mxu0 0.0
  %270 = vmatprep.subr.mxu0 0.0
  %271 = vmatpush1.msra.mxu0 0.0
  %272 = vmatprep.subr.mxu0 0.0
  %273 = vmatpush1.msra.mxu0 0.0
  %274 = vmatprep.subr.mxu0 0.0
  %275 = vmatpush1.msra.mxu0 0.0
  %276 = vmatprep.subr.mxu0 0.0
  %277 = vmatpush1.msra.mxu0 0.0
  %278 = vmatprep.subr.mxu0 0.0
  %279 = vmatpush1.msra.mxu0 0.0
  %280 = vmatprep.subr.mxu0 0.0
  %281 = vmatpush1.msra.mxu0 0.0
  %282 = vmatprep.subr.mxu0 0.0
  %283 = vmatpush1.msra.mxu0 0.0
  %284 = vmatprep.mubr.f32.mxu0 0.0
  %285 = vmatmul.mubr.f32.gmra.mrb[0].mxu0 %v215
  %v286 = vpop.f32.mrb[0].mxu0
  %v287 = vadd.f32 %v213, %v286
  %v288 = vpop.f32.mrb[0].mxu0
  %289 = vdwg.mxu0
  %v290 = vtanh.pop %v287
  %v291 = vmax.f32 %v290, 0.0
  %v292 = vld [vmem:[%s1 + $0x48] sm:$0xff]
  %v293 = vld [vmem:[%s1 + $0x50] sm:$0x1]
  %v294 = vld [vmem:[%s1 + $0x51] sm:$0x1]
  %v295 = vlaneseq
  %v296 = vshrl.u32 %v295, 7
  %v297 = vsub.s32 0, %v296
  %v298 = vrot.slane %v294, %v297
  %v300 = vsel %vm128, %v291, 0
  %v303 = vsel %vm132, %v293, 0
  %305 = vmatprep.subr.mxu0 0.0
  %306 = vmatpush1.msra.mxu0 %v292
  %307 = vmatprep.subr.mxu0 0.0
  %308 = vmatpush1.msra.mxu0 %v303
  %309 = vmatprep.subr.mxu0 0.0
  %310 = vmatpush1.msra.mxu0 0.0
  %311 = vmatprep.subr.mxu0 0.0
  %312 = vmatpush1.msra.mxu0 0.0
  %313 = vmatprep.subr.mxu0 0.0
  %314 = vmatpush1.msra.mxu0 0.0
  %315 = vmatprep.subr.mxu0 0.0
  %316 = vmatpush1.msra.mxu0 0.0
  %317 = vmatprep.subr.mxu0 0.0
  %318 = vmatpush1.msra.mxu0 0.0
  %319 = vmatprep.subr.mxu0 0.0
  %320 = vmatpush1.msra.mxu0 0.0
  %321 = vmatprep.subr.mxu0 0.0
  %322 = vmatpush1.msra.mxu0 0.0
  %323 = vmatprep.subr.mxu0 0.0
  %324 = vmatpush1.msra.mxu0 0.0
  %325 = vmatprep.subr.mxu0 0.0
  %326 = vmatpush1.msra.mxu0 0.0
  %327 = vmatprep.subr.mxu0 0.0
  %328 = vmatpush1.msra.mxu0 0.0
  %329 = vmatprep.subr.mxu0 0.0
  %330 = vmatpush1.msra.mxu0 0.0
  %331 = vmatprep.subr.mxu0 0.0
  %332 = vmatpush1.msra.mxu0 0.0
  %333 = vmatprep.subr.mxu0 0.0
  %334 = vmatpush1.msra.mxu0 0.0
  %335 = vmatprep.subr.mxu0 0.0
  %336 = vmatpush1.msra.mxu0 0.0
  %337 = vmatprep.subr.mxu0 0.0
  %338 = vmatpush1.msra.mxu0 0.0
  %339 = vmatprep.subr.mxu0 0.0
  %340 = vmatpush1.msra.mxu0 0.0
  %341 = vmatprep.subr.mxu0 0.0
  %342 = vmatpush1.msra.mxu0 0.0
  %343 = vmatprep.subr.mxu0 0.0
  %344 = vmatpush1.msra.mxu0 0.0
  %345 = vmatprep.subr.mxu0 0.0
  %346 = vmatpush1.msra.mxu0 0.0
  %347 = vmatprep.subr.mxu0 0.0
  %348 = vmatpush1.msra.mxu0 0.0
  %349 = vmatprep.subr.mxu0 0.0
  %350 = vmatpush1.msra.mxu0 0.0
  %351 = vmatprep.subr.mxu0 0.0
  %352 = vmatpush1.msra.mxu0 0.0
  %353 = vmatprep.subr.mxu0 0.0
  %354 = vmatpush1.msra.mxu0 0.0
  %355 = vmatprep.subr.mxu0 0.0
  %356 = vmatpush1.msra.mxu0 0.0
  %357 = vmatprep.subr.mxu0 0.0
  %358 = vmatpush1.msra.mxu0 0.0
  %359 = vmatprep.subr.mxu0 0.0
  %360 = vmatpush1.msra.mxu0 0.0
  %361 = vmatprep.subr.mxu0 0.0
  %362 = vmatpush1.msra.mxu0 0.0
  %363 = vmatprep.subr.mxu0 0.0
  %364 = vmatpush1.msra.mxu0 0.0
  %365 = vmatprep.subr.mxu0 0.0
  %366 = vmatpush1.msra.mxu0 0.0
  %367 = vmatprep.subr.mxu0 0.0
  %368 = vmatpush1.msra.mxu0 0.0
  %369 = vmatprep.mubr.f32.mxu0 0.0
  %370 = vmatmul.mubr.f32.gmra.mrb[0].mxu0 %v300
  %v371 = vpop.f32.mrb[0].mxu0
  %v372 = vadd.f32 %v298, %v371
  %v373 = vpop.f32.mrb[0].mxu0
  %374 = vdwg.mxu0
  %375 = vst [vmem:[%s2] sm:$0xff] %v372
  // Predicated region
  $region10: #{forward.1} parent=0 // pred_check
    _
  $region11: #{forward.1} parent=0 // pred_check_branch
    %377 = sbr.rel (0) target = $region13
  $region12: #{forward.1} parent=0 // pred_region
    _
  $region13: #{forward.1} parent=0 // pred_fallthru
    _
  // Predicated region
  $region14: #{forward.1} parent=0 // pred_check
    _
  $region15: #{forward.1} parent=0 // pred_check_branch
    %379 = sbr.rel (0) target = $region17
  $region16: #{forward.1} parent=0 // pred_region
    _
  $region17: #{forward.1} parent=0 // pred_fallthru
    _

</llo_original>
